<compile_context>
chip_gen: v7x
topology: tpu7x:2x2x1
jax: 0.10.0
libtpu: 0.0.40
codegen_flags: <defaults>
</compile_context>

<pallas_src>
import jax
import jax.numpy as jnp
from jax.experimental import pallas as pl
from jax.experimental.pallas import tpu as pltpu


def _round_up(v, m):
    return ((v + m - 1) // m) * m


# ----------------------------------------------------------------------------
# Fused PALayer kernel (NCHW-native, one (C, THW) pixel tile per step)
# ----------------------------------------------------------------------------
def _palayer_kernel(x_ref, w1_ref, consts_ref, b2_ref, o_ref):
    """x_ref     : (C, THW)  f32  channels on sublanes, pixels on lanes
       w1_ref    : (HID, C)  f32  first 1x1 conv weight (PyTorch layout, squeezed)
       consts_ref: (HID, 2)  f32  column 0 = b1, column 1 = w2
       b2_ref    : (1,)      f32  second conv bias (SMEM scalar)
       o_ref     : (C, THW)  f32  gated output x * sigmoid(attn)
    """
    x = x_ref[...]                                               # (C, THW)
    # conv1x1 #1 on the MXU, full f32: lane-dense pixel axis is the MXU N dim.
    h = jnp.dot(w1_ref[...], x,
                preferred_element_type=jnp.float32,
                precision=jax.lax.Precision.HIGHEST)             # (HID, THW)
    h = jnp.maximum(h + consts_ref[:, 0:1], 0.0)                 # + b1, ReLU
    # conv1x1 #2 has Cout=1 -> tiny sublane reduction on the VPU/XLU.
    a = jnp.sum(h * consts_ref[:, 1:2], axis=0, keepdims=True) + b2_ref[0]
    a = jax.nn.sigmoid(a)                                        # (1, THW), EUP
    o_ref[...] = x * a                                           # gate, bcast over C


# ----------------------------------------------------------------------------
# Tiling helper: lane-dense pixel tile that divides (padded) H*W
# ----------------------------------------------------------------------------
def _pick_hw_tile(HW, C, *, tile_bytes_cap=2 * 1024 * 1024):
    """Returns (thw, hw_pad): thw is a multiple of 128 (or == HW) dividing hw_pad."""
    cap = max(128, (tile_bytes_cap // (C * 4)) // 128 * 128)
    if HW <= cap:
        return HW, HW                       # single full-width tile (always legal)
    hw_pad = _round_up(HW, 128)
    t = cap
    while t > 128 and hw_pad % t != 0:
        t -= 128
    return t, hw_pad                        # t == 128 always divides hw_pad


# ----------------------------------------------------------------------------
# Wrapper
# ----------------------------------------------------------------------------
def palayer_forward(x_nchw, params, *, tile_bytes_cap=2 * 1024 * 1024):
    """PALayer forward.  x_nchw: (N, C, H, W) f32 -> (N, C, H, W) f32."""
    w1, b1, w2, b2 = params["w1"], params["b1"], params["w2"], params["b2"]
    N, C, H, W = x_nchw.shape
    HID = w1.shape[0]
    HW = H * W

    x = x_nchw.astype(jnp.float32).reshape(N, C, HW)   # free (contiguous) reshape
    thw, hw_pad = _pick_hw_tile(HW, C, tile_bytes_cap=tile_bytes_cap)
    if hw_pad != HW:
        # TODO(synk): ragged H*W handled via a pad copy; could be an in-kernel
        # masked tail store instead (H*W is almost always 128-aligned in TSNet).
        x = jnp.pad(x, ((0, 0), (0, 0), (0, hw_pad - HW)))
    grid_hw = hw_pad // thw

    w1r = w1.reshape(HID, C).astype(jnp.float32)
    consts = jnp.stack([b1.reshape(HID).astype(jnp.float32),
                        w2.reshape(HID).astype(jnp.float32)], axis=1)   # (HID, 2)
    b2r = jnp.reshape(b2, (1,)).astype(jnp.float32)

    cost = pl.CostEstimate(
        flops=int(2 * N * hw_pad * C * HID + 5 * N * hw_pad * HID
                  + 2 * N * hw_pad * C),
        transcendentals=int(N * hw_pad),
        bytes_accessed=int(2 * N * hw_pad * C * 4
                           + (w1r.size + consts.size + 1) * 4),
    )

    out = pl.pallas_call(
        _palayer_kernel,
        out_shape=jax.ShapeDtypeStruct((N, C, hw_pad), jnp.float32),
        grid=(N, grid_hw),
        in_specs=[
            pl.BlockSpec((None, C, thw), lambda n, j: (n, 0, j)),   # pixel tile
            pl.BlockSpec((HID, C), lambda n, j: (0, 0)),            # w1 (invariant)
            pl.BlockSpec((HID, 2), lambda n, j: (0, 0)),            # [b1 | w2]
            pl.BlockSpec(memory_space=pltpu.MemorySpace.SMEM),      # b2 scalar
        ],
        out_specs=pl.BlockSpec((None, C, thw), lambda n, j: (n, 0, j)),
        compiler_params=pltpu.CompilerParams(
            dimension_semantics=("parallel", "parallel"),
            vmem_limit_bytes=32 * 1024 * 1024,
        ),
        cost_estimate=cost,
    )(x, w1r, consts, b2r)

    if hw_pad != HW:
        out = out[:, :, :HW]
    return out.reshape(N, C, H, W)


# ----------------------------------------------------------------------------
# Pure-JAX reference (matches the PyTorch module's forward)
# ----------------------------------------------------------------------------
def palayer_ref(x_nchw, params):
    x = x_nchw.astype(jnp.float32)
    h = jnp.einsum("nchw,dc->ndhw", x, params["w1"],
                   precision=jax.lax.Precision.HIGHEST)
    h = jnp.maximum(h + params["b1"][None, :, None, None], 0.0)
    a = jnp.einsum("ndhw,d->nhw", h, params["w2"],
                   precision=jax.lax.Precision.HIGHEST)[:, None, :, :] + params["b2"]
    return x * jax.nn.sigmoid(a)


# ----------------------------------------------------------------------------
if __name__ == "__main__":
    N, C, H, W = 2, 64, 16, 16          # PALayer(channel=64), as used in TSNet
    HID = C // 8

    key = jax.random.PRNGKey(0)
    k_x, k_w1, k_b1, k_w2, k_b2 = jax.random.split(key, 5)
    s1 = float(C) ** -0.5
    s2 = float(HID) ** -0.5
    params = {
        # Conv2d(C -> HID, 1) weight with the 1x1 spatial dims squeezed: (HID, C)
        "w1": s1 * jax.random.normal(k_w1, (HID, C), jnp.float32),
        "b1": s1 * jax.random.normal(k_b1, (HID,), jnp.float32),
        # Conv2d(HID -> 1, 1) weight squeezed: (HID,)
        "w2": s2 * jax.random.normal(k_w2, (HID,), jnp.float32),
        "b2": s2 * jax.random.normal(k_b2, (), jnp.float32),
    }
    x = jax.random.normal(k_x, (N, C, H, W), jnp.float32)

    fwd = jax.jit(palayer_forward)
    out = fwd(x, params)
    jax.block_until_ready(out)

    ref = palayer_ref(x, params)
    assert out.shape == (N, C, H, W), out.shape
    assert out.dtype == jnp.float32
    max_err = float(jnp.max(jnp.abs(out - ref)))
    assert max_err < 1e-3, f"max abs error {max_err}"
    print("KERNEL_OK")
</pallas_src>

<mosaic_0001>
module attributes {stable_mosaic.version = 11 : i64} {
  func.func @_palayer_kernel(%arg0: i32, %arg1: i32, %arg2: memref<1x64x256xf32, #tpu.memory_space<vmem>>, %arg3: memref<8x64xf32, #tpu.memory_space<vmem>>, %arg4: memref<8x2xf32, #tpu.memory_space<vmem>>, %arg5: memref<1xf32, #tpu.memory_space<smem>>, %arg6: memref<1x64x256xf32, #tpu.memory_space<vmem>>) attributes {dimension_semantics = [#tpu.dimension_semantics<parallel>, #tpu.dimension_semantics<parallel>], iteration_bounds = array<i64: 2, 1>, scalar_prefetch = 0 : i64, scratch_operands = 0 : i64, tpu.core_type = #tpu.core_type<tc>, window_params = [{transform_indices = @transform_0, window_bounds = array<i64: 1, 64, 256>}, {pipeline_mode = #tpu.pipeline_mode<synchronous>, transform_indices = @transform_1, window_bounds = array<i64: 8, 64>}, {pipeline_mode = #tpu.pipeline_mode<synchronous>, transform_indices = @transform_2, window_bounds = array<i64: 8, 2>}, {transform_indices = @transform_3, window_bounds = array<i64: 1>}, {transform_indices = @transform_4, window_bounds = array<i64: 1, 64, 256>}]} {
    %c0 = arith.constant 0 : index
    %c0_0 = arith.constant 0 : index
    %c0_1 = arith.constant 0 : index
    %0 = vector.load %arg2[%c0, %c0_0, %c0_1] : memref<1x64x256xf32, #tpu.memory_space<vmem>>, vector<1x64x256xf32>
    %1 = vector.shape_cast %0 : vector<1x64x256xf32> to vector<64x256xf32>
    %c0_2 = arith.constant 0 : index
    %c0_3 = arith.constant 0 : index
    %2 = vector.load %arg3[%c0_2, %c0_3] : memref<8x64xf32, #tpu.memory_space<vmem>>, vector<8x64xf32>
    %cst = arith.constant dense<0.000000e+00> : vector<8x256xf32>
    %3 = tpu.matmul %2, %1, %cst {dimension_numbers = #tpu.dot_dimension_numbers<[1], [0], [0], [1], [0, 0, 1, 1], [], []>, precision = #tpu.contract_precision<fp32>} : vector<8x64xf32>, vector<64x256xf32>, vector<8x256xf32> -> vector<8x256xf32>
    %c0_4 = arith.constant 0 : index
    %c0_5 = arith.constant 0 : index
    %4 = vector.load %arg4[%c0_4, %c0_5] : memref<8x2xf32, #tpu.memory_space<vmem>>, vector<8x1xf32>
    %5 = vector.broadcast %4 : vector<8x1xf32> to vector<8x256xf32>
    %6 = arith.addf %3, %5 : vector<8x256xf32>
    %cst_6 = arith.constant 0.000000e+00 : f32
    %7 = vector.broadcast %cst_6 : f32 to vector<8x256xf32>
    %8 = arith.maximumf %6, %7 : vector<8x256xf32>
    %c0_7 = arith.constant 0 : index
    %c1 = arith.constant 1 : index
    %9 = vector.load %arg4[%c0_7, %c1] : memref<8x2xf32, #tpu.memory_space<vmem>>, vector<8x1xf32>
    %10 = vector.broadcast %9 : vector<8x1xf32> to vector<8x256xf32>
    %11 = arith.mulf %8, %10 : vector<8x256xf32>
    %cst_8 = arith.constant dense<0.000000e+00> : vector<256xf32>
    %12 = vector.multi_reduction <add>, %11, %cst_8 [0] : vector<8x256xf32> to vector<256xf32>
    %13 = vector.shape_cast %12 : vector<256xf32> to vector<1x256xf32>
    %c0_9 = arith.constant 0 : index
    %14 = memref.load %arg5[%c0_9] : memref<1xf32, #tpu.memory_space<smem>>
    %15 = vector.broadcast %14 : f32 to vector<1x256xf32>
    %16 = arith.addf %13, %15 : vector<1x256xf32>
    %17 = arith.negf %16 : vector<1x256xf32>
    %18 = math.exp %17 : vector<1x256xf32>
    %cst_10 = arith.constant 1.000000e+00 : f32
    %19 = vector.broadcast %cst_10 : f32 to vector<1x256xf32>
    %20 = arith.addf %19, %18 : vector<1x256xf32>
    %21 = arith.divf %19, %20 : vector<1x256xf32>
    %22 = vector.broadcast %21 : vector<1x256xf32> to vector<64x256xf32>
    %23 = arith.mulf %1, %22 : vector<64x256xf32>
    %c0_11 = arith.constant 0 : index
    %c0_12 = arith.constant 0 : index
    %c0_13 = arith.constant 0 : index
    %24 = vector.load %arg6[%c0_11, %c0_12, %c0_13] : memref<1x64x256xf32, #tpu.memory_space<vmem>>, vector<1x64x256xf32>
    %25 = vector.shape_cast %24 : vector<1x64x256xf32> to vector<64x256xf32>
    %26 = vector.shape_cast %23 : vector<64x256xf32> to vector<1x64x256xf32>
    tpu.vector_store %arg6[%c0_11, %c0_12, %c0_13], %26 {strides = array<i32>} : memref<1x64x256xf32, #tpu.memory_space<vmem>>, vector<1x64x256xf32>,
    return
  }
  func.func @transform_0(%arg0: i32, %arg1: i32) -> (i32, i32, i32) {
    %c0_i32 = arith.constant 0 : i32
    %c0_i32_0 = arith.constant 0 : i32
    return %arg0, %c0_i32, %arg1 : i32, i32, i32
  }
  func.func @transform_1(%arg0: i32, %arg1: i32) -> (i32, i32) {
    %c0_i32 = arith.constant 0 : i32
    %c0_i32_0 = arith.constant 0 : i32
    %c0_i32_1 = arith.constant 0 : i32
    return %c0_i32, %c0_i32_0 : i32, i32
  }
  func.func @transform_2(%arg0: i32, %arg1: i32) -> (i32, i32) {
    %c0_i32 = arith.constant 0 : i32
    %c0_i32_0 = arith.constant 0 : i32
    %c0_i32_1 = arith.constant 0 : i32
    return %c0_i32, %c0_i32_0 : i32, i32
  }
  func.func @transform_3(%arg0: i32, %arg1: i32) -> i32 {
    %c0_i32 = arith.constant 0 : i32
    %c0_i32_0 = arith.constant 0 : i32
    return %c0_i32 : i32
  }
  func.func @transform_4(%arg0: i32, %arg1: i32) -> (i32, i32, i32) {
    %c0_i32 = arith.constant 0 : i32
    %c0_i32_0 = arith.constant 0 : i32
    return %arg0, %c0_i32, %arg1 : i32, i32, i32
  }
}

</mosaic_0001>

<llo_original>
// kernel: palayer_forward.1
$region0: #{palayer_forward.1}
  #allocation0 [shape = 'u32[]', space=smem, size = 0x4, offset = 0x4, fixed_abs, tag = 'smem constant byte address 0x4 - core index']
  #allocation1 [shape = 'u32[144,128]{1,0:T(1,128)}', space=vmem, size = 0x12000, scoped, tag = 'internal scratch']
  #allocation2 [shape = 'f32[1]{0:T(128)S(6)}', space=smem, size = 0x200, scoped, tag = 'scoped memory for palayer_forward.1']
  %s0 = inlined_call_operand.vmem [shape: f32[2,64,256], index: 0, kind: input, shape index: {}]
  %s1 = inlined_call_operand.vmem [shape: f32[8,64], index: 1, kind: input, shape index: {}]
  %s2 = inlined_call_operand.vmem [shape: f32[8,2], index: 2, kind: input, shape index: {}]
  %s3 = inlined_call_operand.<no memory space> [shape: f32[1], index: 3, kind: input, shape index: {}]
  %s4 = inlined_call_operand.vmem [shape: f32[2,64,256], index: 4, kind: output, shape index: {}]
  %s5 = sld [smem:[#allocation0]]
  $region49: #{palayer_forward.1} parent=0
    _
  %s7 = ssub.s32 1, %s5
  %s8 = scalar_select 0, %s7, %s5
  %9 = sst [smem:[#allocation2]] %s3
  loop: start=0, step=1, limit=4
  $region2: #{palayer_forward.1} parent=0 // loop_pre_header
    _
  $region3: #{palayer_forward.1} parent=0 // loop_header
    %s11 = sphi 0, %s15
    %p12 = scmp.ge.s32.totalorder %s11, 4
    %s18 = sphi 0, %s30
    %s19 = sphi 0, %s26
    %s20 = sphi 0, %s18
    %s21 = sphi 0, %s19
    %s22 = sphi 0, %s20
    %s23 = sphi 0, %s21
    %s35 = sphi 0, %s37
    %s38 = sphi 0, %s35
    %s39 = sphi 0, %s38
    %s55 = sphi 0, %s39
    %s59 = sphi 0, %s59
    %s61 = sphi 0, %s59
    %s62 = sphi 0, %s61
    %s76 = sphi 0, %s62
    %s80 = sphi 0, %s80
    %s82 = sphi 0, %s80
    %s83 = sphi 0, %s82
    %s97 = sphi 0, %s83
    %s101 = sphi 0, %s101
    %s103 = sphi 0, %s101
    %s104 = sphi 0, %s103
    %s118 = sphi 0, %s104
    %s126 = sphi 0, %s128
    %s129 = sphi 0, %s126
    %s130 = sphi 0, %s129
    %s146 = sphi 0, %s130
  $region4: #{palayer_forward.1} parent=0 // loop_header_branch
    %14 = sbr.rel (%p12) target = $region8
  $region5: #{palayer_forward.1} parent=0 // loop_body
    %s16 = ssub.s32 %s11, 1
    %s17 = ssub.s32 %s11, 2
    %s24 = sadd.s32 1, %s19
    %p25 = scmp.ge.s32.totalorder %s24, 1
    %s26 = scalar_select %p25, 0, %s24
    %s27 = sadd.s32 1, %s18
    %s28 = scalar_select %p25, %s27, %s18
    %p29 = scmp.ge.s32.totalorder %s28, 2
    %s30 = scalar_select %p29, 0, %s28
    %s31 = ssub.s32 %s18, %s30
    %s32 = ssub.s32 %s19, %s26
    %s33 = sor.u32 %s31, %s32
    %p34 = scmp.eq.s32.totalorder %s33, 0
    %s36 = sadd.s32 %s35, 1
    %s37 = scalar_select %p34, %s35, %s36
    %p40 = pneg %p34
    %p41 = scmp.eq.s32.totalorder %s11, 1
    %p42 = por %p40, %p41
    %p43 = scmp.ne.s32.totalorder %s35, %s38
    %p44 = scmp.eq.s32.totalorder %s11, 0
    %p45 = por %p43, %p44
    %p46 = scmp.ne.s32.totalorder %s35, %s38
    %p47 = scmp.eq.s32.totalorder %s16, 1
    %p48 = por %p46, %p47
    %p49 = scmp.ne.s32.totalorder %s38, %s39
    %p50 = scmp.eq.s32.totalorder %s16, 0
    %p51 = por %p49, %p50
    %p52 = scmp.ne.s32.totalorder %s38, %s39
    %p53 = scmp.eq.s32.totalorder %s17, 1
    %p54 = por %p52, %p53
    %p56 = scmp.ne.s32.totalorder %s39, %s55
    %p57 = scmp.eq.s32.totalorder %s17, 0
    %p58 = por %p56, %p57
    %s60 = sadd.s32 %s59, 1
    %p63 = scmp.eq.s32.totalorder %s11, 1
    %p64 = scmp.ne.s32.totalorder %s59, %s61
    %p65 = scmp.eq.s32.totalorder %s11, 0
    %p66 = por %p64, %p65
    %p67 = scmp.ne.s32.totalorder %s59, %s61
    %p68 = scmp.eq.s32.totalorder %s16, 1
    %p69 = por %p67, %p68
    %p70 = scmp.ne.s32.totalorder %s61, %s62
    %p71 = scmp.eq.s32.totalorder %s16, 0
    %p72 = por %p70, %p71
    %p73 = scmp.ne.s32.totalorder %s61, %s62
    %p74 = scmp.eq.s32.totalorder %s17, 1
    %p75 = por %p73, %p74
    %p77 = scmp.ne.s32.totalorder %s62, %s76
    %p78 = scmp.eq.s32.totalorder %s17, 0
    %p79 = por %p77, %p78
    %s81 = sadd.s32 %s80, 1
    %p84 = scmp.eq.s32.totalorder %s11, 1
    %p85 = scmp.ne.s32.totalorder %s80, %s82
    %p86 = scmp.eq.s32.totalorder %s11, 0
    %p87 = por %p85, %p86
    %p88 = scmp.ne.s32.totalorder %s80, %s82
    %p89 = scmp.eq.s32.totalorder %s16, 1
    %p90 = por %p88, %p89
    %p91 = scmp.ne.s32.totalorder %s82, %s83
    %p92 = scmp.eq.s32.totalorder %s16, 0
    %p93 = por %p91, %p92
    %p94 = scmp.ne.s32.totalorder %s82, %s83
    %p95 = scmp.eq.s32.totalorder %s17, 1
    %p96 = por %p94, %p95
    %p98 = scmp.ne.s32.totalorder %s83, %s97
    %p99 = scmp.eq.s32.totalorder %s17, 0
    %p100 = por %p98, %p99
    %s102 = sadd.s32 %s101, 1
    %p105 = scmp.eq.s32.totalorder %s11, 1
    %p106 = scmp.ne.s32.totalorder %s101, %s103
    %p107 = scmp.eq.s32.totalorder %s11, 0
    %p108 = por %p106, %p107
    %p109 = scmp.ne.s32.totalorder %s101, %s103
    %p110 = scmp.eq.s32.totalorder %s16, 1
    %p111 = por %p109, %p110
    %p112 = scmp.ne.s32.totalorder %s103, %s104
    %p113 = scmp.eq.s32.totalorder %s16, 0
    %p114 = por %p112, %p113
    %p115 = scmp.ne.s32.totalorder %s103, %s104
    %p116 = scmp.eq.s32.totalorder %s17, 1
    %p117 = por %p115, %p116
    %p119 = scmp.ne.s32.totalorder %s104, %s118
    %p120 = scmp.eq.s32.totalorder %s17, 0
    %p121 = por %p119, %p120
    %s122 = ssub.s32 %s18, %s30
    %s123 = ssub.s32 %s19, %s26
    %s124 = sor.u32 %s122, %s123
    %p125 = scmp.eq.s32.totalorder %s124, 0
    %s127 = sadd.s32 %s126, 1
    %s128 = scalar_select %p125, %s126, %s127
    %p131 = pneg %p125
    %p132 = scmp.eq.s32.totalorder %s11, 1
    %p133 = por %p131, %p132
    %p134 = scmp.ne.s32.totalorder %s126, %s129
    %p135 = scmp.eq.s32.totalorder %s11, 0
    %p136 = por %p134, %p135
    %p137 = scmp.ne.s32.totalorder %s126, %s129
    %p138 = scmp.eq.s32.totalorder %s16, 1
    %p139 = por %p137, %p138
    %p140 = scmp.ne.s32.totalorder %s129, %s130
    %p141 = scmp.eq.s32.totalorder %s16, 0
    %p142 = por %p140, %p141
    %p143 = scmp.ne.s32.totalorder %s129, %s130
    %p144 = scmp.eq.s32.totalorder %s17, 1
    %p145 = por %p143, %p144
    %p147 = scmp.ne.s32.totalorder %s130, %s146
    %p148 = scmp.eq.s32.totalorder %s17, 0
    %p149 = por %p147, %p148
    %p150 = scmp.le.s32.totalorder 1, %s11
    %p151 = scmp.lt.s32.totalorder %s11, 3
    %p152 = pnand %p150, %p151
    %p153 = pneg %p152
    // Predicated region
    $region9: #{palayer_forward.1} parent=5 // pred_check
      _
    $region10: #{palayer_forward.1} parent=5 // pred_check_branch
      %155 = sbr.rel (%p152) target = $region12
    $region11: #{palayer_forward.1} parent=5 // pred_region
      %s156 = ssub.s32 %s11, 1
      // Predicated region
      $region13: #{palayer_forward.1} parent=11 // pred_check
        %p157 = pneg %p72
      $region14: #{palayer_forward.1} parent=11 // pred_check_branch
        %159 = sbr.rel (%p157) target = $region16
      $region15: #{palayer_forward.1} parent=11 // pred_region
        _
      $region16: #{palayer_forward.1} parent=11 // pred_fallthru
        _
      // Predicated region
      $region17: #{palayer_forward.1} parent=11 // pred_check
        %p160 = pneg %p93
      $region18: #{palayer_forward.1} parent=11 // pred_check_branch
        %162 = sbr.rel (%p160) target = $region20
      $region19: #{palayer_forward.1} parent=11 // pred_region
        _
      $region20: #{palayer_forward.1} parent=11 // pred_fallthru
        _
      // Predicated region
      $region21: #{palayer_forward.1} parent=11 // pred_check
        %p163 = pneg %p114
      $region22: #{palayer_forward.1} parent=11 // pred_check_branch
        %165 = sbr.rel (%p163) target = $region24
      $region23: #{palayer_forward.1} parent=11 // pred_region
        _
      $region24: #{palayer_forward.1} parent=11 // pred_fallthru
        _
    $region12: #{palayer_forward.1} parent=5 // pred_fallthru
      _
    %p166 = scmp.lt.s32.totalorder %s11, 2
    // Predicated region
    $region25: #{palayer_forward.1} parent=5 // pred_check
      %p167 = pneg %p166
    $region26: #{palayer_forward.1} parent=5 // pred_check_branch
      %169 = sbr.rel (%p167) target = $region28
    $region27: #{palayer_forward.1} parent=5 // pred_region
      // Predicated region
      $region29: #{palayer_forward.1} parent=27 // pred_check
        %p170 = pneg %p45
      $region30: #{palayer_forward.1} parent=27 // pred_check_branch
        %172 = sbr.rel (%p170) target = $region32
      $region31: #{palayer_forward.1} parent=27 // pred_region
        %s173 = smul.u32 2, %s19
        %p174 = scmp.lt.s32.totalorder %s18, 1
        %s175 = scalar_select %p174, %s18, 1
        %p176 = scmp.lt.s32.totalorder %s173, 1
        %s177 = scalar_select %p176, %s173, 1
        %s178 = smul.addr %s175, 16
        %s179 = sadd.s32 %s177, %s178
        %s180 = smul.addr %s179, 8
        %s181 = scalar_lea.vmem %s0, %s180
        %s182 = smul.u32 2, %s19
      $region32: #{palayer_forward.1} parent=27 // pred_fallthru
        _
    $region28: #{palayer_forward.1} parent=5 // pred_fallthru
      _
    %p183 = scmp.le.s32.totalorder 1, %s11
    %p184 = scmp.lt.s32.totalorder %s11, 3
    %p185 = pnand %p183, %p184
    %p186 = pneg %p185
    // Predicated region
    $region33: #{palayer_forward.1} parent=5 // pred_check
      _
    $region34: #{palayer_forward.1} parent=5 // pred_check_branch
      %188 = sbr.rel (%p185) target = $region36
    $region35: #{palayer_forward.1} parent=5 // pred_region
      %s189 = ssub.s32 %s11, 1
      %s190 = smul.u32 2, %s21
      %p191 = scmp.lt.s32.totalorder %s20, 1
      %s192 = scalar_select %p191, %s20, 1
      %p193 = scmp.lt.s32.totalorder %s190, 1
      %s194 = scalar_select %p193, %s190, 1
      %s195 = smul.addr %s192, 16
      %s196 = sadd.s32 %s194, %s195
      %s197 = smul.addr %s196, 8
      %s198 = scalar_lea.vmem %s0, %s197
      %p199 = pneg %p51
      %p200 = pneg %p48
      %p201 = pneg %p72
      %p202 = pneg %p69
      %p203 = pneg %p93
      %p204 = pneg %p90
      %p205 = pneg %p114
      %p206 = pneg %p111
      %p207 = pneg %p142
      %p208 = pneg %p139
      %s209 = smul.u32 2, %s21
      %p210 = scmp.lt.s32.totalorder %s20, 1
      %s211 = scalar_select %p210, %s20, 1
      %p212 = scmp.lt.s32.totalorder %s209, 1
      %s213 = scalar_select %p212, %s209, 1
      %s214 = smul.addr %s211, 16
      %s215 = sadd.s32 %s213, %s214
      %s216 = smul.addr %s215, 8
      %s217 = scalar_lea.vmem %s4, %s216
      %s218 = smul.u32 2, %s21
      %p219 = scmp.lt.s32.totalorder %s20, 1
      %s220 = scalar_select %p219, %s20, 1
      %p221 = scmp.lt.s32.totalorder %s218, 1
      %s222 = scalar_select %p221, %s218, 1
      %s223 = smul.addr %s220, 16
      %s224 = sadd.s32 %s222, %s223
      %s225 = smul.addr %s224, 8
      %s226 = scalar_lea.vmem %s0, %s225
      %s227 = smul.u32 2, %s21
      %s228 = smul.u32 2, %s21
      %p229 = scmp.lt.s32.totalorder %s20, 1
      %s230 = scalar_select %p229, %s20, 1
      %p231 = scmp.lt.s32.totalorder %s228, 1
      %s232 = scalar_select %p231, %s228, 1
      %s233 = smul.addr %s230, 16
      %s234 = sadd.s32 %s232, %s233
      %s235 = smul.addr %s234, 8
      %s236 = scalar_lea.vmem %s4, %s235
      %s237 = smul.u32 2, %s21
      %v238 = vld [vmem:[%s226] sm:$0xff]
      %v239 = vld [vmem:[%s226 + $0x8] sm:$0xff]
      %v240 = vld [vmem:[%s226 + $0x10] sm:$0xff]
      %v241 = vld [vmem:[%s226 + $0x18] sm:$0xff]
      %v242 = vld [vmem:[%s226 + $0x20] sm:$0xff]
      %v243 = vld [vmem:[%s226 + $0x28] sm:$0xff]
      %v244 = vld [vmem:[%s226 + $0x30] sm:$0xff]
      %v245 = vld [vmem:[%s226 + $0x38] sm:$0xff]
      %v246 = vld [vmem:[%s226 + $0x40] sm:$0xff]
      %v247 = vld [vmem:[%s226 + $0x48] sm:$0xff]
      %v248 = vld [vmem:[%s226 + $0x50] sm:$0xff]
      %v249 = vld [vmem:[%s226 + $0x58] sm:$0xff]
      %v250 = vld [vmem:[%s226 + $0x60] sm:$0xff]
      %v251 = vld [vmem:[%s226 + $0x68] sm:$0xff]
      %v252 = vld [vmem:[%s226 + $0x70] sm:$0xff]
      %v253 = vld [vmem:[%s226 + $0x78] sm:$0xff]
      %v254 = vld [vmem:[%s1] sm:$0xff]
      %v255 = vld [vmem:[%s2] sm:$0xff]
      %257 = vset.pattern.permute.xlu0 0
      %258 = vperm.xlu0 %257, %v255
      %v259 = vpop.permute.xlu0 %258
      %vm261 = vcmask 523264
      %v263 = vsel %vm261, %v254, 0
      %v265 = vand.u32 %v239, 4294901760
      %266 = vmatprep.subr.mxu0 %v265
      %v267 = vand.u32 %v238, 4294901760
      %268 = vmatpush1.msra.mxu0 %v267
      %v269 = vand.u32 %v241, 4294901760
      %270 = vmatprep.subr.mxu0 %v269
      %v271 = vand.u32 %v240, 4294901760
      %272 = vmatpush1.msra.mxu0 %v271
      %v273 = vand.u32 %v243, 4294901760
      %274 = vmatprep.subr.mxu0 %v273
      %v275 = vand.u32 %v242, 4294901760
      %276 = vmatpush1.msra.mxu0 %v275
      %v277 = vand.u32 %v245, 4294901760
      %278 = vmatprep.subr.mxu0 %v277
      %v279 = vand.u32 %v244, 4294901760
      %280 = vmatpush1.msra.mxu0 %v279
      %v281 = vand.u32 %v247, 4294901760
      %282 = vmatprep.subr.mxu0 %v281
      %v283 = vand.u32 %v246, 4294901760
      %284 = vmatpush1.msra.mxu0 %v283
      %v285 = vand.u32 %v249, 4294901760
      %286 = vmatprep.subr.mxu0 %v285
      %v287 = vand.u32 %v248, 4294901760
      %288 = vmatpush1.msra.mxu0 %v287
      %v289 = vand.u32 %v251, 4294901760
      %290 = vmatprep.subr.mxu0 %v289
      %v291 = vand.u32 %v250, 4294901760
      %292 = vmatpush1.msra.mxu0 %v291
      %v293 = vand.u32 %v253, 4294901760
      %294 = vmatprep.subr.mxu0 %v293
      %v295 = vand.u32 %v252, 4294901760
      %296 = vmatpush1.msra.mxu0 %v295
      %297 = vmatprep.subr.mxu0 0.0
      %298 = vmatpush1.msra.mxu0 0.0
      %299 = vmatprep.subr.mxu0 0.0
      %300 = vmatpush1.msra.mxu0 0.0
      %301 = vmatprep.subr.mxu0 0.0
      %302 = vmatpush1.msra.mxu0 0.0
      %303 = vmatprep.subr.mxu0 0.0
      %304 = vmatpush1.msra.mxu0 0.0
      %305 = vmatprep.subr.mxu0 0.0
      %306 = vmatpush1.msra.mxu0 0.0
      %307 = vmatprep.subr.mxu0 0.0
      %308 = vmatpush1.msra.mxu0 0.0
      %309 = vmatprep.subr.mxu0 0.0
      %310 = vmatpush1.msra.mxu0 0.0
      %311 = vmatprep.subr.mxu0 0.0
      %312 = vmatpush1.msra.mxu0 0.0
      %313 = vmatprep.subr.mxu0 0.0
      %314 = vmatpush1.msra.mxu0 0.0
      %315 = vmatprep.subr.mxu0 0.0
      %316 = vmatpush1.msra.mxu0 0.0
      %317 = vmatprep.subr.mxu0 0.0
      %318 = vmatpush1.msra.mxu0 0.0
      %319 = vmatprep.subr.mxu0 0.0
      %320 = vmatpush1.msra.mxu0 0.0
      %321 = vmatprep.subr.mxu0 0.0
      %322 = vmatpush1.msra.mxu0 0.0
      %323 = vmatprep.subr.mxu0 0.0
      %324 = vmatpush1.msra.mxu0 0.0
      %325 = vmatprep.subr.mxu0 0.0
      %326 = vmatpush1.msra.mxu0 0.0
      %327 = vmatprep.subr.mxu0 0.0
      %328 = vmatpush1.msra.mxu0 0.0
      %329 = vmatprep.subr.mxu0 0.0
      %330 = vmatpush1.msra.mxu0 0.0
      %331 = vmatprep.subr.mxu0 0.0
      %332 = vmatpush1.msra.mxu0 0.0
      %333 = vmatprep.subr.mxu0 0.0
      %334 = vmatpush1.msra.mxu0 0.0
      %335 = vmatprep.subr.mxu0 0.0
      %336 = vmatpush1.msra.mxu0 0.0
      %337 = vmatprep.subr.mxu0 0.0
      %338 = vmatpush1.msra.mxu0 0.0
      %339 = vmatprep.subr.mxu0 0.0
      %340 = vmatpush1.msra.mxu0 0.0
      %341 = vmatprep.subr.mxu0 0.0
      %342 = vmatpush1.msra.mxu0 0.0
      %343 = vmatprep.subr.mxu0 0.0
      %344 = vmatpush1.msra.mxu0 0.0
      %345 = vmatprep.mubr.f32.mxu0 0.0
      %v346 = vand.u32 %v263, 4294901760
      %v347 = vsub.f32 %v263, %v346
      %v348 = vand.u32 %v347, 4294901760
      %v349 = vsub.f32 %v347, %v348
      %v350 = vand.u32 %v349, 4294901760
      %351 = vmatmul.mubr.f32.gmra.mrb[0].mxu0 %v350
      %v352 = vpop.f32.mrb[0].mxu0
      %v353 = vadd.f32 %v259, %v352
      %v354 = vpop.f32.mrb[0].mxu0
      %v355 = vadd.f32 %v259, %v354
      %356 = vdwg.mxu0
      %v357 = vand.u32 %v239, 4294901760
      %v358 = vsub.f32 %v239, %v357
      %v359 = vand.u32 %v358, 4294901760
      %v360 = vsub.f32 %v358, %v359
      %v361 = vand.u32 %v360, 4294901760
      %362 = vmatprep.subr.mxu0 %v361
      %v363 = vand.u32 %v238, 4294901760
      %v364 = vsub.f32 %v238, %v363
      %v365 = vand.u32 %v364, 4294901760
      %v366 = vsub.f32 %v364, %v365
      %v367 = vand.u32 %v366, 4294901760
      %368 = vmatpush1.msra.mxu0 %v367
      %v369 = vand.u32 %v241, 4294901760
      %v370 = vsub.f32 %v241, %v369
      %v371 = vand.u32 %v370, 4294901760
      %v372 = vsub.f32 %v370, %v371
      %v373 = vand.u32 %v372, 4294901760
      %374 = vmatprep.subr.mxu0 %v373
      %v375 = vand.u32 %v240, 4294901760
      %v376 = vsub.f32 %v240, %v375
      %v377 = vand.u32 %v376, 4294901760
      %v378 = vsub.f32 %v376, %v377
      %v379 = vand.u32 %v378, 4294901760
      %380 = vmatpush1.msra.mxu0 %v379
      %v381 = vand.u32 %v243, 4294901760
      %v382 = vsub.f32 %v243, %v381
      %v383 = vand.u32 %v382, 4294901760
      %v384 = vsub.f32 %v382, %v383
      %v385 = vand.u32 %v384, 4294901760
      %386 = vmatprep.subr.mxu0 %v385
      %v387 = vand.u32 %v242, 4294901760
      %v388 = vsub.f32 %v242, %v387
      %v389 = vand.u32 %v388, 4294901760
      %v390 = vsub.f32 %v388, %v389
      %v391 = vand.u32 %v390, 4294901760
      %392 = vmatpush1.msra.mxu0 %v391
      %v393 = vand.u32 %v245, 4294901760
      %v394 = vsub.f32 %v245, %v393
      %v395 = vand.u32 %v394, 4294901760
      %v396 = vsub.f32 %v394, %v395
      %v397 = vand.u32 %v396, 4294901760
      %398 = vmatprep.subr.mxu0 %v397
      %v399 = vand.u32 %v244, 4294901760
      %v400 = vsub.f32 %v244, %v399
      %v401 = vand.u32 %v400, 4294901760
      %v402 = vsub.f32 %v400, %v401
      %v403 = vand.u32 %v402, 4294901760
      %404 = vmatpush1.msra.mxu0 %v403
      %v405 = vand.u32 %v247, 4294901760
      %v406 = vsub.f32 %v247, %v405
      %v407 = vand.u32 %v406, 4294901760
      %v408 = vsub.f32 %v406, %v407
      %v409 = vand.u32 %v408, 4294901760
      %410 = vmatprep.subr.mxu0 %v409
      %v411 = vand.u32 %v246, 4294901760
      %v412 = vsub.f32 %v246, %v411
      %v413 = vand.u32 %v412, 4294901760
      %v414 = vsub.f32 %v412, %v413
      %v415 = vand.u32 %v414, 4294901760
      %416 = vmatpush1.msra.mxu0 %v415
      %v417 = vand.u32 %v249, 4294901760
      %v418 = vsub.f32 %v249, %v417
      %v419 = vand.u32 %v418, 4294901760
      %v420 = vsub.f32 %v418, %v419
      %v421 = vand.u32 %v420, 4294901760
      %422 = vmatprep.subr.mxu0 %v421
      %v423 = vand.u32 %v248, 4294901760
      %v424 = vsub.f32 %v248, %v423
      %v425 = vand.u32 %v424, 4294901760
      %v426 = vsub.f32 %v424, %v425
      %v427 = vand.u32 %v426, 4294901760
      %428 = vmatpush1.msra.mxu0 %v427
      %v429 = vand.u32 %v251, 4294901760
      %v430 = vsub.f32 %v251, %v429
      %v431 = vand.u32 %v430, 4294901760
      %v432 = vsub.f32 %v430, %v431
      %v433 = vand.u32 %v432, 4294901760
      %434 = vmatprep.subr.mxu0 %v433
      %v435 = vand.u32 %v250, 4294901760
      %v436 = vsub.f32 %v250, %v435
      %v437 = vand.u32 %v436, 4294901760
      %v438 = vsub.f32 %v436, %v437
      %v439 = vand.u32 %v438, 4294901760
      %440 = vmatpush1.msra.mxu0 %v439
      %v441 = vand.u32 %v253, 4294901760
      %v442 = vsub.f32 %v253, %v441
      %v443 = vand.u32 %v442, 4294901760
      %v444 = vsub.f32 %v442, %v443
      %v445 = vand.u32 %v444, 4294901760
      %446 = vmatprep.subr.mxu0 %v445
      %v447 = vand.u32 %v252, 4294901760
      %v448 = vsub.f32 %v252, %v447
      %v449 = vand.u32 %v448, 4294901760
      %v450 = vsub.f32 %v448, %v449
      %v451 = vand.u32 %v450, 4294901760
      %452 = vmatpush1.msra.mxu0 %v451
      %453 = vmatprep.subr.mxu0 0.0
      %454 = vmatpush1.msra.mxu0 0.0
      %455 = vmatprep.subr.mxu0 0.0
      %456 = vmatpush1.msra.mxu0 0.0
      %457 = vmatprep.subr.mxu0 0.0
      %458 = vmatpush1.msra.mxu0 0.0
      %459 = vmatprep.subr.mxu0 0.0
      %460 = vmatpush1.msra.mxu0 0.0
      %461 = vmatprep.subr.mxu0 0.0
      %462 = vmatpush1.msra.mxu0 0.0
      %463 = vmatprep.subr.mxu0 0.0
      %464 = vmatpush1.msra.mxu0 0.0
      %465 = vmatprep.subr.mxu0 0.0
      %466 = vmatpush1.msra.mxu0 0.0
      %467 = vmatprep.subr.mxu0 0.0
      %468 = vmatpush1.msra.mxu0 0.0
      %469 = vmatprep.subr.mxu0 0.0
      %470 = vmatpush1.msra.mxu0 0.0
      %471 = vmatprep.subr.mxu0 0.0
      %472 = vmatpush1.msra.mxu0 0.0
      %473 = vmatprep.subr.mxu0 0.0
      %474 = vmatpush1.msra.mxu0 0.0
      %475 = vmatprep.subr.mxu0 0.0
      %476 = vmatpush1.msra.mxu0 0.0
      %477 = vmatprep.subr.mxu0 0.0
      %478 = vmatpush1.msra.mxu0 0.0
      %479 = vmatprep.subr.mxu0 0.0
      %480 = vmatpush1.msra.mxu0 0.0
      %481 = vmatprep.subr.mxu0 0.0
      %482 = vmatpush1.msra.mxu0 0.0
      %483 = vmatprep.subr.mxu0 0.0
      %484 = vmatpush1.msra.mxu0 0.0
      %485 = vmatprep.subr.mxu0 0.0
      %486 = vmatpush1.msra.mxu0 0.0
      %487 = vmatprep.subr.mxu0 0.0
      %488 = vmatpush1.msra.mxu0 0.0
      %489 = vmatprep.subr.mxu0 0.0
      %490 = vmatpush1.msra.mxu0 0.0
      %491 = vmatprep.subr.mxu0 0.0
      %492 = vmatpush1.msra.mxu0 0.0
      %493 = vmatprep.subr.mxu0 0.0
      %494 = vmatpush1.msra.mxu0 0.0
      %495 = vmatprep.subr.mxu0 0.0
      %496 = vmatpush1.msra.mxu0 0.0
      %497 = vmatprep.subr.mxu0 0.0
      %498 = vmatpush1.msra.mxu0 0.0
      %499 = vmatprep.subr.mxu0 0.0
      %500 = vmatpush1.msra.mxu0 0.0
      %501 = vmatprep.mubr.f32.mxu0 0.0
      %v502 = vand.u32 %v263, 4294901760
      %503 = vmatmul.mubr.f32.gmra.mrb[0].mxu0 %v502
      %v504 = vpop.f32.mrb[0].mxu0
      %v505 = vadd.f32 %v353, %v504
      %v506 = vpop.f32.mrb[0].mxu0
      %v507 = vadd.f32 %v355, %v506
      %508 = vdwg.mxu0
      %v509 = vand.u32 %v239, 4294901760
      %v510 = vsub.f32 %v239, %v509
      %511 = vmatprep.subr.mxu0 %v510
      %v512 = vand.u32 %v238, 4294901760
      %v513 = vsub.f32 %v238, %v512
      %514 = vmatpush1.msra.mxu0 %v513
      %v515 = vand.u32 %v241, 4294901760
      %v516 = vsub.f32 %v241, %v515
      %517 = vmatprep.subr.mxu0 %v516
      %v518 = vand.u32 %v240, 4294901760
      %v519 = vsub.f32 %v240, %v518
      %520 = vmatpush1.msra.mxu0 %v519
      %v521 = vand.u32 %v243, 4294901760
      %v522 = vsub.f32 %v243, %v521
      %523 = vmatprep.subr.mxu0 %v522
      %v524 = vand.u32 %v242, 4294901760
      %v525 = vsub.f32 %v242, %v524
      %526 = vmatpush1.msra.mxu0 %v525
      %v527 = vand.u32 %v245, 4294901760
      %v528 = vsub.f32 %v245, %v527
      %529 = vmatprep.subr.mxu0 %v528
      %v530 = vand.u32 %v244, 4294901760
      %v531 = vsub.f32 %v244, %v530
      %532 = vmatpush1.msra.mxu0 %v531
      %v533 = vand.u32 %v247, 4294901760
      %v534 = vsub.f32 %v247, %v533
      %535 = vmatprep.subr.mxu0 %v534
      %v536 = vand.u32 %v246, 4294901760
      %v537 = vsub.f32 %v246, %v536
      %538 = vmatpush1.msra.mxu0 %v537
      %v539 = vand.u32 %v249, 4294901760
      %v540 = vsub.f32 %v249, %v539
      %541 = vmatprep.subr.mxu0 %v540
      %v542 = vand.u32 %v248, 4294901760
      %v543 = vsub.f32 %v248, %v542
      %544 = vmatpush1.msra.mxu0 %v543
      %v545 = vand.u32 %v251, 4294901760
      %v546 = vsub.f32 %v251, %v545
      %547 = vmatprep.subr.mxu0 %v546
      %v548 = vand.u32 %v250, 4294901760
      %v549 = vsub.f32 %v250, %v548
      %550 = vmatpush1.msra.mxu0 %v549
      %v551 = vand.u32 %v253, 4294901760
      %v552 = vsub.f32 %v253, %v551
      %553 = vmatprep.subr.mxu0 %v552
      %v554 = vand.u32 %v252, 4294901760
      %v555 = vsub.f32 %v252, %v554
      %556 = vmatpush1.msra.mxu0 %v555
      %557 = vmatprep.subr.mxu0 0.0
      %558 = vmatpush1.msra.mxu0 0.0
      %559 = vmatprep.subr.mxu0 0.0
      %560 = vmatpush1.msra.mxu0 0.0
      %561 = vmatprep.subr.mxu0 0.0
      %562 = vmatpush1.msra.mxu0 0.0
      %563 = vmatprep.subr.mxu0 0.0
      %564 = vmatpush1.msra.mxu0 0.0
      %565 = vmatprep.subr.mxu0 0.0
      %566 = vmatpush1.msra.mxu0 0.0
      %567 = vmatprep.subr.mxu0 0.0
      %568 = vmatpush1.msra.mxu0 0.0
      %569 = vmatprep.subr.mxu0 0.0
      %570 = vmatpush1.msra.mxu0 0.0
      %571 = vmatprep.subr.mxu0 0.0
      %572 = vmatpush1.msra.mxu0 0.0
      %573 = vmatprep.subr.mxu0 0.0
      %574 = vmatpush1.msra.mxu0 0.0
      %575 = vmatprep.subr.mxu0 0.0
      %576 = vmatpush1.msra.mxu0 0.0
      %577 = vmatprep.subr.mxu0 0.0
      %578 = vmatpush1.msra.mxu0 0.0
      %579 = vmatprep.subr.mxu0 0.0
      %580 = vmatpush1.msra.mxu0 0.0
      %581 = vmatprep.subr.mxu0 0.0
      %582 = vmatpush1.msra.mxu0 0.0
      %583 = vmatprep.subr.mxu0 0.0
      %584 = vmatpush1.msra.mxu0 0.0
      %585 = vmatprep.subr.mxu0 0.0
      %586 = vmatpush1.msra.mxu0 0.0
      %587 = vmatprep.subr.mxu0 0.0
      %588 = vmatpush1.msra.mxu0 0.0
      %589 = vmatprep.subr.mxu0 0.0
      %590 = vmatpush1.msra.mxu0 0.0
      %591 = vmatprep.subr.mxu0 0.0
      %592 = vmatpush1.msra.mxu0 0.0
      %593 = vmatprep.subr.mxu0 0.0
      %594 = vmatpush1.msra.mxu0 0.0
      %595 = vmatprep.subr.mxu0 0.0
      %596 = vmatpush1.msra.mxu0 0.0
      %597 = vmatprep.subr.mxu0 0.0
      %598 = vmatpush1.msra.mxu0 0.0
      %599 = vmatprep.subr.mxu0 0.0
      %600 = vmatpush1.msra.mxu0 0.0
      %601 = vmatprep.subr.mxu0 0.0
      %602 = vmatpush1.msra.mxu0 0.0
      %603 = vmatprep.subr.mxu0 0.0
      %604 = vmatpush1.msra.mxu0 0.0
      %605 = vmatprep.mubr.f32.mxu0 0.0
      %v606 = vand.u32 %v263, 4294901760
      %v607 = vsub.f32 %v263, %v606
      %608 = vmatmul.mubr.f32.gmra.mrb[0].mxu0 %v607
      %v609 = vpop.f32.mrb[0].mxu0
      %v610 = vadd.f32 %v505, %v609
      %v611 = vpop.f32.mrb[0].mxu0
      %v612 = vadd.f32 %v507, %v611
      %613 = vdwg.mxu0
      %v614 = vand.u32 %v239, 4294901760
      %615 = vmatprep.subr.mxu0 %v614
      %v616 = vand.u32 %v238, 4294901760
      %617 = vmatpush1.msra.mxu0 %v616
      %v618 = vand.u32 %v241, 4294901760
      %619 = vmatprep.subr.mxu0 %v618
      %v620 = vand.u32 %v240, 4294901760
      %621 = vmatpush1.msra.mxu0 %v620
      %v622 = vand.u32 %v243, 4294901760
      %623 = vmatprep.subr.mxu0 %v622
      %v624 = vand.u32 %v242, 4294901760
      %625 = vmatpush1.msra.mxu0 %v624
      %v626 = vand.u32 %v245, 4294901760
      %627 = vmatprep.subr.mxu0 %v626
      %v628 = vand.u32 %v244, 4294901760
      %629 = vmatpush1.msra.mxu0 %v628
      %v630 = vand.u32 %v247, 4294901760
      %631 = vmatprep.subr.mxu0 %v630
      %v632 = vand.u32 %v246, 4294901760
      %633 = vmatpush1.msra.mxu0 %v632
      %v634 = vand.u32 %v249, 4294901760
      %635 = vmatprep.subr.mxu0 %v634
      %v636 = vand.u32 %v248, 4294901760
      %637 = vmatpush1.msra.mxu0 %v636
      %v638 = vand.u32 %v251, 4294901760
      %639 = vmatprep.subr.mxu0 %v638
      %v640 = vand.u32 %v250, 4294901760
      %641 = vmatpush1.msra.mxu0 %v640
      %v642 = vand.u32 %v253, 4294901760
      %643 = vmatprep.subr.mxu0 %v642
      %v644 = vand.u32 %v252, 4294901760
      %645 = vmatpush1.msra.mxu0 %v644
      %646 = vmatprep.subr.mxu0 0.0
      %647 = vmatpush1.msra.mxu0 0.0
      %648 = vmatprep.subr.mxu0 0.0
      %649 = vmatpush1.msra.mxu0 0.0
      %650 = vmatprep.subr.mxu0 0.0
      %651 = vmatpush1.msra.mxu0 0.0
      %652 = vmatprep.subr.mxu0 0.0
      %653 = vmatpush1.msra.mxu0 0.0
      %654 = vmatprep.subr.mxu0 0.0
      %655 = vmatpush1.msra.mxu0 0.0
      %656 = vmatprep.subr.mxu0 0.0
      %657 = vmatpush1.msra.mxu0 0.0
      %658 = vmatprep.subr.mxu0 0.0
      %659 = vmatpush1.msra.mxu0 0.0
      %660 = vmatprep.subr.mxu0 0.0
      %661 = vmatpush1.msra.mxu0 0.0
      %662 = vmatprep.subr.mxu0 0.0
      %663 = vmatpush1.msra.mxu0 0.0
      %664 = vmatprep.subr.mxu0 0.0
      %665 = vmatpush1.msra.mxu0 0.0
      %666 = vmatprep.subr.mxu0 0.0
      %667 = vmatpush1.msra.mxu0 0.0
      %668 = vmatprep.subr.mxu0 0.0
      %669 = vmatpush1.msra.mxu0 0.0
      %670 = vmatprep.subr.mxu0 0.0
      %671 = vmatpush1.msra.mxu0 0.0
      %672 = vmatprep.subr.mxu0 0.0
      %673 = vmatpush1.msra.mxu0 0.0
      %674 = vmatprep.subr.mxu0 0.0
      %675 = vmatpush1.msra.mxu0 0.0
      %676 = vmatprep.subr.mxu0 0.0
      %677 = vmatpush1.msra.mxu0 0.0
      %678 = vmatprep.subr.mxu0 0.0
      %679 = vmatpush1.msra.mxu0 0.0
      %680 = vmatprep.subr.mxu0 0.0
      %681 = vmatpush1.msra.mxu0 0.0
      %682 = vmatprep.subr.mxu0 0.0
      %683 = vmatpush1.msra.mxu0 0.0
      %684 = vmatprep.subr.mxu0 0.0
      %685 = vmatpush1.msra.mxu0 0.0
      %686 = vmatprep.subr.mxu0 0.0
      %687 = vmatpush1.msra.mxu0 0.0
      %688 = vmatprep.subr.mxu0 0.0
      %689 = vmatpush1.msra.mxu0 0.0
      %690 = vmatprep.subr.mxu0 0.0
      %691 = vmatpush1.msra.mxu0 0.0
      %692 = vmatprep.subr.mxu0 0.0
      %693 = vmatpush1.msra.mxu0 0.0
      %694 = vmatprep.mubr.f32.mxu0 0.0
      %v695 = vand.u32 %v263, 4294901760
      %v696 = vsub.f32 %v263, %v695
      %v697 = vand.u32 %v696, 4294901760
      %698 = vmatmul.mubr.f32.gmra.mrb[0].mxu0 %v697
      %v699 = vpop.f32.mrb[0].mxu0
      %v700 = vadd.f32 %v610, %v699
      %v701 = vpop.f32.mrb[0].mxu0
      %v702 = vadd.f32 %v612, %v701
      %703 = vdwg.mxu0
      %v704 = vand.u32 %v239, 4294901760
      %v705 = vsub.f32 %v239, %v704
      %v706 = vand.u32 %v705, 4294901760
      %707 = vmatprep.subr.mxu0 %v706
      %v708 = vand.u32 %v238, 4294901760
      %v709 = vsub.f32 %v238, %v708
      %v710 = vand.u32 %v709, 4294901760
      %711 = vmatpush1.msra.mxu0 %v710
      %v712 = vand.u32 %v241, 4294901760
      %v713 = vsub.f32 %v241, %v712
      %v714 = vand.u32 %v713, 4294901760
      %715 = vmatprep.subr.mxu0 %v714
      %v716 = vand.u32 %v240, 4294901760
      %v717 = vsub.f32 %v240, %v716
      %v718 = vand.u32 %v717, 4294901760
      %719 = vmatpush1.msra.mxu0 %v718
      %v720 = vand.u32 %v243, 4294901760
      %v721 = vsub.f32 %v243, %v720
      %v722 = vand.u32 %v721, 4294901760
      %723 = vmatprep.subr.mxu0 %v722
      %v724 = vand.u32 %v242, 4294901760
      %v725 = vsub.f32 %v242, %v724
      %v726 = vand.u32 %v725, 4294901760
      %727 = vmatpush1.msra.mxu0 %v726
      %v728 = vand.u32 %v245, 4294901760
      %v729 = vsub.f32 %v245, %v728
      %v730 = vand.u32 %v729, 4294901760
      %731 = vmatprep.subr.mxu0 %v730
      %v732 = vand.u32 %v244, 4294901760
      %v733 = vsub.f32 %v244, %v732
      %v734 = vand.u32 %v733, 4294901760
      %735 = vmatpush1.msra.mxu0 %v734
      %v736 = vand.u32 %v247, 4294901760
      %v737 = vsub.f32 %v247, %v736
      %v738 = vand.u32 %v737, 4294901760
      %739 = vmatprep.subr.mxu0 %v738
      %v740 = vand.u32 %v246, 4294901760
      %v741 = vsub.f32 %v246, %v740
      %v742 = vand.u32 %v741, 4294901760
      %743 = vmatpush1.msra.mxu0 %v742
      %v744 = vand.u32 %v249, 4294901760
      %v745 = vsub.f32 %v249, %v744
      %v746 = vand.u32 %v745, 4294901760
      %747 = vmatprep.subr.mxu0 %v746
      %v748 = vand.u32 %v248, 4294901760
      %v749 = vsub.f32 %v248, %v748
      %v750 = vand.u32 %v749, 4294901760
      %751 = vmatpush1.msra.mxu0 %v750
      %v752 = vand.u32 %v251, 4294901760
      %v753 = vsub.f32 %v251, %v752
      %v754 = vand.u32 %v753, 4294901760
      %755 = vmatprep.subr.mxu0 %v754
      %v756 = vand.u32 %v250, 4294901760
      %v757 = vsub.f32 %v250, %v756
      %v758 = vand.u32 %v757, 4294901760
      %759 = vmatpush1.msra.mxu0 %v758
      %v760 = vand.u32 %v253, 4294901760
      %v761 = vsub.f32 %v253, %v760
      %v762 = vand.u32 %v761, 4294901760
      %763 = vmatprep.subr.mxu0 %v762
      %v764 = vand.u32 %v252, 4294901760
      %v765 = vsub.f32 %v252, %v764
      %v766 = vand.u32 %v765, 4294901760
      %767 = vmatpush1.msra.mxu0 %v766
      %768 = vmatprep.subr.mxu0 0.0
      %769 = vmatpush1.msra.mxu0 0.0
      %770 = vmatprep.subr.mxu0 0.0
      %771 = vmatpush1.msra.mxu0 0.0
      %772 = vmatprep.subr.mxu0 0.0
      %773 = vmatpush1.msra.mxu0 0.0
      %774 = vmatprep.subr.mxu0 0.0
      %775 = vmatpush1.msra.mxu0 0.0
      %776 = vmatprep.subr.mxu0 0.0
      %777 = vmatpush1.msra.mxu0 0.0
      %778 = vmatprep.subr.mxu0 0.0
      %779 = vmatpush1.msra.mxu0 0.0
      %780 = vmatprep.subr.mxu0 0.0
      %781 = vmatpush1.msra.mxu0 0.0
      %782 = vmatprep.subr.mxu0 0.0
      %783 = vmatpush1.msra.mxu0 0.0
      %784 = vmatprep.subr.mxu0 0.0
      %785 = vmatpush1.msra.mxu0 0.0
      %786 = vmatprep.subr.mxu0 0.0
      %787 = vmatpush1.msra.mxu0 0.0
      %788 = vmatprep.subr.mxu0 0.0
      %789 = vmatpush1.msra.mxu0 0.0
      %790 = vmatprep.subr.mxu0 0.0
      %791 = vmatpush1.msra.mxu0 0.0
      %792 = vmatprep.subr.mxu0 0.0
      %793 = vmatpush1.msra.mxu0 0.0
      %794 = vmatprep.subr.mxu0 0.0
      %795 = vmatpush1.msra.mxu0 0.0
      %796 = vmatprep.subr.mxu0 0.0
      %797 = vmatpush1.msra.mxu0 0.0
      %798 = vmatprep.subr.mxu0 0.0
      %799 = vmatpush1.msra.mxu0 0.0
      %800 = vmatprep.subr.mxu0 0.0
      %801 = vmatpush1.msra.mxu0 0.0
      %802 = vmatprep.subr.mxu0 0.0
      %803 = vmatpush1.msra.mxu0 0.0
      %804 = vmatprep.subr.mxu0 0.0
      %805 = vmatpush1.msra.mxu0 0.0
      %806 = vmatprep.subr.mxu0 0.0
      %807 = vmatpush1.msra.mxu0 0.0
      %808 = vmatprep.subr.mxu0 0.0
      %809 = vmatpush1.msra.mxu0 0.0
      %810 = vmatprep.subr.mxu0 0.0
      %811 = vmatpush1.msra.mxu0 0.0
      %812 = vmatprep.subr.mxu0 0.0
      %813 = vmatpush1.msra.mxu0 0.0
      %814 = vmatprep.subr.mxu0 0.0
      %815 = vmatpush1.msra.mxu0 0.0
      %816 = vmatprep.mubr.f32.mxu0 0.0
      %v817 = vand.u32 %v263, 4294901760
      %818 = vmatmul.mubr.f32.gmra.mrb[0].mxu0 %v817
      %v819 = vpop.f32.mrb[0].mxu0
      %v820 = vadd.f32 %v700, %v819
      %v821 = vpop.f32.mrb[0].mxu0
      %v822 = vadd.f32 %v702, %v821
      %823 = vdwg.mxu0
      %v824 = vand.u32 %v239, 4294901760
      %825 = vmatprep.subr.mxu0 %v824
      %v826 = vand.u32 %v238, 4294901760
      %827 = vmatpush1.msra.mxu0 %v826
      %v828 = vand.u32 %v241, 4294901760
      %829 = vmatprep.subr.mxu0 %v828
      %v830 = vand.u32 %v240, 4294901760
      %831 = vmatpush1.msra.mxu0 %v830
      %v832 = vand.u32 %v243, 4294901760
      %833 = vmatprep.subr.mxu0 %v832
      %v834 = vand.u32 %v242, 4294901760
      %835 = vmatpush1.msra.mxu0 %v834
      %v836 = vand.u32 %v245, 4294901760
      %837 = vmatprep.subr.mxu0 %v836
      %v838 = vand.u32 %v244, 4294901760
      %839 = vmatpush1.msra.mxu0 %v838
      %v840 = vand.u32 %v247, 4294901760
      %841 = vmatprep.subr.mxu0 %v840
      %v842 = vand.u32 %v246, 4294901760
      %843 = vmatpush1.msra.mxu0 %v842
      %v844 = vand.u32 %v249, 4294901760
      %845 = vmatprep.subr.mxu0 %v844
      %v846 = vand.u32 %v248, 4294901760
      %847 = vmatpush1.msra.mxu0 %v846
      %v848 = vand.u32 %v251, 4294901760
      %849 = vmatprep.subr.mxu0 %v848
      %v850 = vand.u32 %v250, 4294901760
      %851 = vmatpush1.msra.mxu0 %v850
      %v852 = vand.u32 %v253, 4294901760
      %853 = vmatprep.subr.mxu0 %v852
      %v854 = vand.u32 %v252, 4294901760
      %855 = vmatpush1.msra.mxu0 %v854
      %856 = vmatprep.subr.mxu0 0.0
      %857 = vmatpush1.msra.mxu0 0.0
      %858 = vmatprep.subr.mxu0 0.0
      %859 = vmatpush1.msra.mxu0 0.0
      %860 = vmatprep.subr.mxu0 0.0
      %861 = vmatpush1.msra.mxu0 0.0
      %862 = vmatprep.subr.mxu0 0.0
      %863 = vmatpush1.msra.mxu0 0.0
      %864 = vmatprep.subr.mxu0 0.0
      %865 = vmatpush1.msra.mxu0 0.0
      %866 = vmatprep.subr.mxu0 0.0
      %867 = vmatpush1.msra.mxu0 0.0
      %868 = vmatprep.subr.mxu0 0.0
      %869 = vmatpush1.msra.mxu0 0.0
      %870 = vmatprep.subr.mxu0 0.0
      %871 = vmatpush1.msra.mxu0 0.0
      %872 = vmatprep.subr.mxu0 0.0
      %873 = vmatpush1.msra.mxu0 0.0
      %874 = vmatprep.subr.mxu0 0.0
      %875 = vmatpush1.msra.mxu0 0.0
      %876 = vmatprep.subr.mxu0 0.0
      %877 = vmatpush1.msra.mxu0 0.0
      %878 = vmatprep.subr.mxu0 0.0
      %879 = vmatpush1.msra.mxu0 0.0
      %880 = vmatprep.subr.mxu0 0.0
      %881 = vmatpush1.msra.mxu0 0.0
      %882 = vmatprep.subr.mxu0 0.0
      %883 = vmatpush1.msra.mxu0 0.0
      %884 = vmatprep.subr.mxu0 0.0
      %885 = vmatpush1.msra.mxu0 0.0
      %886 = vmatprep.subr.mxu0 0.0
      %887 = vmatpush1.msra.mxu0 0.0
      %888 = vmatprep.subr.mxu0 0.0
      %889 = vmatpush1.msra.mxu0 0.0
      %890 = vmatprep.subr.mxu0 0.0
      %891 = vmatpush1.msra.mxu0 0.0
      %892 = vmatprep.subr.mxu0 0.0
      %893 = vmatpush1.msra.mxu0 0.0
      %894 = vmatprep.subr.mxu0 0.0
      %895 = vmatpush1.msra.mxu0 0.0
      %896 = vmatprep.subr.mxu0 0.0
      %897 = vmatpush1.msra.mxu0 0.0
      %898 = vmatprep.subr.mxu0 0.0
      %899 = vmatpush1.msra.mxu0 0.0
      %900 = vmatprep.subr.mxu0 0.0
      %901 = vmatpush1.msra.mxu0 0.0
      %902 = vmatprep.subr.mxu0 0.0
      %903 = vmatpush1.msra.mxu0 0.0
      %904 = vmatprep.mubr.f32.mxu0 0.0
      %v905 = vand.u32 %v263, 4294901760
      %906 = vmatmul.mubr.f32.gmra.mrb[0].mxu0 %v905
      %v907 = vpop.f32.mrb[0].mxu0
      %v908 = vadd.f32 %v820, %v907
      %v909 = vpop.f32.mrb[0].mxu0
      %v910 = vadd.f32 %v822, %v909
      %911 = vdwg.mxu0
      %v912 = vmax.f32 %v908, 0.0
      %v913 = vmax.f32 %v910, 0.0
      %914 = vset.pattern.permute.xlu0 1
      %915 = vperm.xlu0 %914, %v255
      %v916 = vpop.permute.xlu0 %915
      %v918 = vmul.f32 %v912, %v916
      %v919 = vmul.f32 %v913, %v916
      %v920 = vrot.slane %v918, 4
      %v921 = vadd.f32 %v918, %v920
      %v922 = vrot.slane %v921, 2
      %v923 = vadd.f32 %v921, %v922
      %v924 = vrot.slane %v923, 1
      %v925 = vadd.f32 %v923, %v924
      %v926 = vrot.slane %v919, 4
      %v927 = vadd.f32 %v919, %v926
      %v928 = vrot.slane %v927, 2
      %v929 = vadd.f32 %v927, %v928
      %v930 = vrot.slane %v929, 1
      %v931 = vadd.f32 %v929, %v930
      %s932 = sld [smem:[#allocation2]]
      %v933 = vstv %s932
      %v934 = vadd.f32 %v925, %v933
      %v935 = vadd.f32 %v931, %v933
      %v936 = vxor.u32 %v934, 2147483648
      %v937 = vxor.u32 %v935, 2147483648
      %v938 = vmul.f32 %v936, 1.442695
      %v939 = vpow.pop %v938
      %v940 = vmul.f32 %v937, 1.442695
      %v941 = vpow.pop %v940
      %v942 = vadd.f32 %v939, 1.0
      %v943 = vadd.f32 %v941, 1.0
      %v944 = vrcp.pop %v942
      %v945 = vmul.f32 1.0, %v944
      %v946 = vrcp.pop %v943
      %v947 = vmul.f32 1.0, %v946
      %v948 = vmul.f32 %v238, %v945
      %v949 = vmul.f32 %v239, %v947
      %v950 = vmul.f32 %v240, %v945
      %v951 = vmul.f32 %v241, %v947
      %v952 = vmul.f32 %v242, %v945
      %v953 = vmul.f32 %v243, %v947
      %v954 = vmul.f32 %v244, %v945
      %v955 = vmul.f32 %v245, %v947
      %v956 = vmul.f32 %v246, %v945
      %v957 = vmul.f32 %v247, %v947
      %v958 = vmul.f32 %v248, %v945
      %v959 = vmul.f32 %v249, %v947
      %v960 = vmul.f32 %v250, %v945
      %v961 = vmul.f32 %v251, %v947
      %v962 = vmul.f32 %v252, %v945
      %v963 = vmul.f32 %v253, %v947
      %964 = vst [vmem:[%s236] sm:$0xff] %v948
      %965 = vst [vmem:[%s236 + $0x8] sm:$0xff] %v949
      %966 = vst [vmem:[%s236 + $0x10] sm:$0xff] %v950
      %967 = vst [vmem:[%s236 + $0x18] sm:$0xff] %v951
      %968 = vst [vmem:[%s236 + $0x20] sm:$0xff] %v952
      %969 = vst [vmem:[%s236 + $0x28] sm:$0xff] %v953
      %970 = vst [vmem:[%s236 + $0x30] sm:$0xff] %v954
      %971 = vst [vmem:[%s236 + $0x38] sm:$0xff] %v955
      %972 = vst [vmem:[%s236 + $0x40] sm:$0xff] %v956
      %973 = vst [vmem:[%s236 + $0x48] sm:$0xff] %v957
      %974 = vst [vmem:[%s236 + $0x50] sm:$0xff] %v958
      %975 = vst [vmem:[%s236 + $0x58] sm:$0xff] %v959
      %976 = vst [vmem:[%s236 + $0x60] sm:$0xff] %v960
      %977 = vst [vmem:[%s236 + $0x68] sm:$0xff] %v961
      %978 = vst [vmem:[%s236 + $0x70] sm:$0xff] %v962
      %979 = vst [vmem:[%s236 + $0x78] sm:$0xff] %v963
      %s980 = smul.u32 2, %s21
      %p981 = scmp.lt.s32.totalorder %s20, 1
      %s982 = scalar_select %p981, %s20, 1
      %p983 = scmp.lt.s32.totalorder %s980, 1
      %s984 = scalar_select %p983, %s980, 1
      %s985 = smul.addr %s982, 16
      %s986 = sadd.s32 %s984, %s985
      %s987 = smul.addr %s986, 8
      %s988 = scalar_lea.vmem %s4, %s987
      // Predicated region
      $region37: #{palayer_forward.1} parent=35 // pred_check
        %p989 = pneg %p139
      $region38: #{palayer_forward.1} parent=35 // pred_check_branch
        %991 = sbr.rel (%p989) target = $region40
      $region39: #{palayer_forward.1} parent=35 // pred_region
        %s992 = smul.u32 2, %s21
      $region40: #{palayer_forward.1} parent=35 // pred_fallthru
        _
    $region36: #{palayer_forward.1} parent=5 // pred_fallthru
      _
    %p993 = scmp.le.s32.totalorder 2, %s11
    // Predicated region
    $region41: #{palayer_forward.1} parent=5 // pred_check
      %p994 = pneg %p993
    $region42: #{palayer_forward.1} parent=5 // pred_check_branch
      %996 = sbr.rel (%p994) target = $region44
    $region43: #{palayer_forward.1} parent=5 // pred_region
      %s997 = ssub.s32 %s11, 2
      // Predicated region
      $region45: #{palayer_forward.1} parent=43 // pred_check
        %p998 = pneg %p145
      $region46: #{palayer_forward.1} parent=43 // pred_check_branch
        %1000 = sbr.rel (%p998) target = $region48
      $region47: #{palayer_forward.1} parent=43 // pred_region
        %s1001 = smul.u32 2, %s23
        %p1002 = scmp.lt.s32.totalorder %s22, 1
        %s1003 = scalar_select %p1002, %s22, 1
        %p1004 = scmp.lt.s32.totalorder %s1001, 1
        %s1005 = scalar_select %p1004, %s1001, 1
        %s1006 = smul.addr %s1003, 16
        %s1007 = sadd.s32 %s1005, %s1006
        %s1008 = smul.addr %s1007, 8
        %s1009 = scalar_lea.vmem %s4, %s1008
      $region48: #{palayer_forward.1} parent=43 // pred_fallthru
        _
    $region44: #{palayer_forward.1} parent=5 // pred_fallthru
      _
  $region6: #{palayer_forward.1} parent=0 // loop_footer
    %s15 = sadd.s32 1, %s11
  $region7: #{palayer_forward.1} parent=0 // loop_footer_branch
    %10 = sbr.rel target = $region3
  $region8: #{palayer_forward.1} parent=0 // loop_exit
    _

</llo_original>
